<compile_context>
chip_gen: v5e
topology: v5e:2x2
jax: 0.10.0
libtpu: 0.0.40
codegen_flags: <defaults>
</compile_context>

<pallas_src>
import math

import jax
import jax.numpy as jnp
from jax import lax
from jax.experimental import pallas as pl
from jax.experimental.pallas import tpu as pltpu


def _round_up(x, m):
    return ((x + m - 1) // m) * m


# ----------------------------------------------------------------------------
# Fused Q/K/V projection kernel (one launch, M-tiled, lane-dense (M, 3D) out)
# ----------------------------------------------------------------------------
def _fused_qkv_kernel(xq_ref, xk_ref, xv_ref, wq_ref, wk_ref, wv_ref, b_ref, o_ref):
    yq = jnp.dot(xq_ref[...], wq_ref[...], preferred_element_type=jnp.float32)
    yk = jnp.dot(xk_ref[...], wk_ref[...], preferred_element_type=jnp.float32)
    yv = jnp.dot(xv_ref[...], wv_ref[...], preferred_element_type=jnp.float32)
    o_ref[...] = (jnp.concatenate([yq, yk, yv], axis=-1) + b_ref[...]).astype(o_ref.dtype)


def pallas_fused_qkv(xq, xk, xv, wq, wk, wv, b_cat, *, tm=256):
    """[xq@Wq+bq | xk@Wk+bk | xv@Wv+bv] -> (M, 3*D), tiled & pipelined over M."""
    M, D = xq.shape
    tm = min(tm, _round_up(M, 8))            # tm % 8 == 0, sized for VMEM
    Mp = _round_up(M, tm)
    if Mp != M:
        pad = ((0, Mp - M), (0, 0))
        xq, xk, xv = (jnp.pad(a, pad) for a in (xq, xk, xv))
    x_spec = pl.BlockSpec((tm, D), lambda i: (i, 0))
    w_spec = pl.BlockSpec((D, D), lambda i: (0, 0))
    out = pl.pallas_call(
        _fused_qkv_kernel,
        out_shape=jax.ShapeDtypeStruct((Mp, 3 * D), jnp.float32),
        grid=(Mp // tm,),
        in_specs=[x_spec, x_spec, x_spec, w_spec, w_spec, w_spec,
                  pl.BlockSpec((1, 3 * D), lambda i: (0, 0))],
        out_specs=pl.BlockSpec((tm, 3 * D), lambda i: (i, 0)),
        compiler_params=pltpu.CompilerParams(dimension_semantics=("parallel",)),
    )(xq, xk, xv, wq, wk, wv, b_cat.reshape(1, 3 * D))
    return out if Mp == M else out[:M]


# ----------------------------------------------------------------------------
# Generic M-tiled linear (used for the output projection)
# ----------------------------------------------------------------------------
def _linear_kernel(x_ref, w_ref, b_ref, o_ref):
    o_ref[...] = (
        jnp.dot(x_ref[...], w_ref[...], preferred_element_type=jnp.float32)
        + b_ref[...]
    ).astype(o_ref.dtype)


def pallas_linear(x2d, w, b, *, tm=256):
    M, K = x2d.shape
    _, n_out = w.shape
    tm = min(tm, _round_up(M, 8))
    Mp = _round_up(M, tm)
    if Mp != M:
        x2d = jnp.pad(x2d, ((0, Mp - M), (0, 0)))
    out = pl.pallas_call(
        _linear_kernel,
        out_shape=jax.ShapeDtypeStruct((Mp, n_out), jnp.float32),
        grid=(Mp // tm,),
        in_specs=[pl.BlockSpec((tm, K), lambda i: (i, 0)),
                  pl.BlockSpec((K, n_out), lambda i: (0, 0)),
                  pl.BlockSpec((1, n_out), lambda i: (0, 0))],
        out_specs=pl.BlockSpec((tm, n_out), lambda i: (i, 0)),
        compiler_params=pltpu.CompilerParams(dimension_semantics=("parallel",)),
    )(x2d, w, b.reshape(1, n_out))
    return out if Mp == M else out[:M]


# ----------------------------------------------------------------------------
# Fused box-attention kernel: per-batch, all heads, WG proj + relu + log +
# softmax + PV in one pass.  No wrapper transposes: heads are selected via
# static column slices of the (N, 3D) QKV slab, and the output is written in
# (N, H*d_k) head-concatenated layout.
# ----------------------------------------------------------------------------
def _make_box_attn_kernel(num_heads, d_model, d_k, store_attn):
    inv_sqrt_dk = 1.0 / math.sqrt(d_k)

    def kernel(qkv_ref, rel_ref, wgt_ref, wgb_ref, o_ref, *rest):
        attn_ref = rest[0] if store_attn else None
        qkv = qkv_ref[0]            # (N, 3*D)
        rel = rel_ref[0]            # (N, N, dim_g)

        outs = []
        probs = []
        for h in range(num_heads):  # static unroll, H == 8
            lo = h * d_k
            q = qkv[:, lo:lo + d_k]                               # (N, d_k)
            k = qkv[:, d_model + lo:d_model + lo + d_k]           # (N, d_k)
            v = qkv[:, 2 * d_model + lo:2 * d_model + lo + d_k]   # (N, d_k)

            # Fused geometry bias: log(max(rel @ wg_h + b_h, 1e-6)).
            # relu is subsumed by the clamp since 1e-6 > 0.
            wg_h = wgt_ref[h:h + 1, :]                            # (1, dim_g)
            g_h = jnp.sum(rel * wg_h, axis=-1) + wgb_ref[h:h + 1, :]   # (N, N)
            log_g = jnp.log(jnp.maximum(g_h, 1e-6))

            # Scores: contract last dims of both operands (no k.T / XLU transpose).
            s = lax.dot_general(q, k, (((1,), (1,)), ((), ())),
                                preferred_element_type=jnp.float32) * inv_sqrt_dk
            w = log_g + s
            w = w - jnp.max(w, axis=-1, keepdims=True)
            e = jnp.exp(w)
            p = e * pl.reciprocal(jnp.sum(e, axis=-1, keepdims=True), approx=True)

            outs.append(jnp.dot(p, v, preferred_element_type=jnp.float32))
            if store_attn:
                probs.append(p)

        # Single lane-dense store of the head-concatenated output.
        o_ref[0] = jnp.concatenate(outs, axis=-1).astype(o_ref.dtype)
        if store_attn:
            attn_ref[0] = jnp.stack(probs, axis=0).astype(attn_ref.dtype)

    return kernel


def pallas_box_attention(qkv, rel, wg_t, wg_b, *, num_heads, d_k, store_attn=False):
    """qkv: (B, N, 3D); rel: (B, N, N, dim_g); wg_t: (H, dim_g); wg_b: (H, 1)."""
    B, N, three_d = qkv.shape
    d_model = three_d // 3
    dim_g = wg_t.shape[1]
    H = num_heads

    kernel = _make_box_attn_kernel(H, d_model, d_k, store_attn)

    out_shape = jax.ShapeDtypeStruct((B, N, d_model), jnp.float32)
    out_spec = pl.BlockSpec((1, N, d_model), lambda b: (b, 0, 0))
    if store_attn:
        out_shape = (out_shape, jax.ShapeDtypeStruct((B, H, N, N), jnp.float32))
        out_spec = (out_spec, pl.BlockSpec((1, H, N, N), lambda b: (b, 0, 0, 0)))

    return pl.pallas_call(
        kernel,
        out_shape=out_shape,
        grid=(B,),
        in_specs=[
            pl.BlockSpec((1, N, three_d), lambda b: (b, 0, 0)),
            pl.BlockSpec((1, N, N, dim_g), lambda b: (b, 0, 0, 0)),
            pl.BlockSpec((H, dim_g), lambda b: (0, 0)),
            pl.BlockSpec((H, 1), lambda b: (0, 0)),
        ],
        out_specs=out_spec,
        compiler_params=pltpu.CompilerParams(dimension_semantics=("parallel",)),
    )(qkv, rel, wg_t, wg_b)


# ----------------------------------------------------------------------------
# Glue (plain JAX): geometry embedding
# ----------------------------------------------------------------------------
def box_relational_embedding(f_g, dim_g=64, wave_len=1000.0, trignometric=True):
    """f_g: (B, N, 4) -> (B, N, N, dim_g)."""
    B, N, _ = f_g.shape
    x_min, y_min, x_max, y_max = jnp.split(f_g, 4, axis=-1)   # each (B, N, 1)
    cx = (x_min + x_max) * 0.5
    cy = (y_min + y_max) * 0.5
    w = x_max - x_min + 1.0
    h = y_max - y_min + 1.0

    delta_x = cx - cx.reshape(B, 1, N)                        # (B, N, N)
    delta_x = jnp.log(jnp.maximum(jnp.abs(delta_x / w), 0.001))
    delta_y = cy - cy.reshape(B, 1, N)
    delta_y = jnp.log(jnp.maximum(jnp.abs(delta_y / h), 0.001))
    delta_w = jnp.log(w / w.reshape(B, 1, N))
    delta_h = jnp.log(h / h.reshape(B, 1, N))

    position_mat = jnp.stack([delta_x, delta_y, delta_w, delta_h], axis=-1)  # (B,N,N,4)
    if not trignometric:
        return position_mat

    feat_range = jnp.arange(dim_g // 8, dtype=jnp.float32)
    dim_mat = 1.0 / jnp.power(wave_len, feat_range / (dim_g / 8.0))          # (8,)
    mul_mat = 100.0 * position_mat[..., None] * dim_mat                      # (B,N,N,4,8)
    mul_mat = mul_mat.reshape(B, N, N, -1)                                   # (B,N,N,32)
    return jnp.concatenate([jnp.sin(mul_mat), jnp.cos(mul_mat)], axis=-1)    # (B,N,N,64)


class BoxMultiHeadedAttentionPallas:
    def __init__(self, h, d_model, trignometric_embedding=True, key=None,
                 store_attn=False):
        assert d_model % h == 0
        # The PyTorch module concatenates exactly 8 WG projections over the head
        # dim, so the forward only broadcasts correctly when h == 8.
        assert h == 8
        self.trig = trignometric_embedding
        self.h = h
        self.d_k = d_model // h
        self.d_model = d_model
        self.dim_g = 64 if trignometric_embedding else 4
        # Flag-gated (B, H, N, N) attention output: skipping it halves the
        # attention kernel's HBM write traffic when only the layer output is needed.
        self.store_attn = store_attn

        keys = jax.random.split(key, 10)
        s = 1.0 / math.sqrt(d_model)
        self.Wq = jax.random.normal(keys[0], (d_model, d_model), jnp.float32) * s
        self.Wk = jax.random.normal(keys[1], (d_model, d_model), jnp.float32) * s
        self.Wv = jax.random.normal(keys[2], (d_model, d_model), jnp.float32) * s
        self.Wo = jax.random.normal(keys[3], (d_model, d_model), jnp.float32) * s
        self.bq = jax.random.normal(keys[4], (d_model,), jnp.float32) * 0.01
        self.bk = jax.random.normal(keys[5], (d_model,), jnp.float32) * 0.01
        self.bv = jax.random.normal(keys[6], (d_model,), jnp.float32) * 0.01
        self.bo = jax.random.normal(keys[7], (d_model,), jnp.float32) * 0.01
        # 8 Linear(dim_g -> 1) layers packed as one (dim_g, 8) matrix.
        self.WG_w = (jax.random.normal(keys[8], (self.dim_g, 8), jnp.float32)
                     / math.sqrt(self.dim_g))
        self.WG_b = jax.random.normal(keys[9], (8,), jnp.float32) * 0.01

        # Kernel-side pre-packed layouts.
        self.bqkv = jnp.concatenate([self.bq, self.bk, self.bv])   # (3*D,)
        self.WG_wT = self.WG_w.T                                   # (8, dim_g)
        self.WG_b2 = self.WG_b.reshape(8, 1)                       # (8, 1)
        self.box_attn = None

    def __call__(self, input_query, input_key, input_value, input_box, mask=None):
        # TODO(synk): optional attention mask and train-mode dropout (stochastic)
        # are not implemented; this reproduces the eval-mode, mask=None forward.
        B, N, D = input_query.shape

        rel = box_relational_embedding(input_box, self.dim_g, trignometric=self.trig)

        # One launch for all three projections -> (B, N, 3D), no transposes.
        qkv = pallas_fused_qkv(input_query.reshape(-1, D),
                               input_key.reshape(-1, D),
                               input_value.reshape(-1, D),
                               self.Wq, self.Wk, self.Wv, self.bqkv)
        qkv = qkv.reshape(B, N, 3 * D)

        res = pallas_box_attention(qkv, rel, self.WG_wT, self.WG_b2,
                                   num_heads=self.h, d_k=self.d_k,
                                   store_attn=self.store_attn)
        if self.store_attn:
            out, self.box_attn = res
        else:
            out, self.box_attn = res, None

        # `out` is already (B, N, h*d_k) head-concatenated: pure reshape, no
        # transpose, straight into the output projection.
        y = pallas_linear(out.reshape(-1, D), self.Wo, self.bo)
        return y.reshape(B, N, D)


# Pure-JAX reference (mirrors the PyTorch forward) for correctness checks.
def reference_forward(m, input_query, input_key, input_value, input_box):
    B, N, D = input_query.shape
    rel = box_relational_embedding(input_box, m.dim_g, trignometric=m.trig)

    def proj(x, w, b):
        return (x.reshape(-1, D) @ w + b).reshape(B, N, m.h, m.d_k).transpose(0, 2, 1, 3)

    q = proj(input_query, m.Wq, m.bq)
    k = proj(input_key, m.Wk, m.bk)
    v = proj(input_value, m.Wv, m.bv)
    g = (rel.reshape(-1, m.dim_g) @ m.WG_w + m.WG_b).reshape(B, N, N, m.h)
    g = jax.nn.relu(g.transpose(0, 3, 1, 2))
    s = jnp.einsum("bhqd,bhkd->bhqk", q, k) / math.sqrt(m.d_k)
    w = jnp.log(jnp.maximum(g, 1e-6)) + s
    p = jax.nn.softmax(w, axis=-1)
    o = jnp.einsum("bhqk,bhkd->bhqd", p, v)
    x = o.transpose(0, 2, 1, 3).reshape(B, N, D)
    y = (x.reshape(-1, D) @ m.Wo + m.bo).reshape(B, N, D)
    return y, p


if __name__ == "__main__":
    B, N, d_model, h = 2, 8, 64, 8

    root = jax.random.PRNGKey(0)
    k_param, k_q, k_k, k_v, k_bmin, k_bwh = jax.random.split(root, 6)

    module = BoxMultiHeadedAttentionPallas(h, d_model, trignometric_embedding=True,
                                           key=k_param, store_attn=False)

    input_query = jax.random.normal(k_q, (B, N, d_model), jnp.float32)
    input_key = jax.random.normal(k_k, (B, N, d_model), jnp.float32)
    input_value = jax.random.normal(k_v, (B, N, d_model), jnp.float32)

    # Boxes: (x_min, y_min, x_max, y_max) with positive extents.
    mins = jax.random.uniform(k_bmin, (B, N, 2), jnp.float32, 0.0, 20.0)
    wh = jax.random.uniform(k_bwh, (B, N, 2), jnp.float32, 1.0, 10.0)
    input_box = jnp.concatenate([mins, mins + wh], axis=-1)          # (B, N, 4)

    out = module(input_query, input_key, input_value, input_box)
    out = jax.block_until_ready(out)

    ref_out, ref_attn = reference_forward(module, input_query, input_key,
                                          input_value, input_box)
    assert out.shape == (B, N, d_model)
    # Tolerance loosened slightly for pl.reciprocal(approx=True) in the softmax.
    assert bool(jnp.allclose(out, ref_out, rtol=1e-2, atol=1e-2))

    # Also exercise the flag-gated attention-probability output path.
    module.store_attn = True
    out2 = jax.block_until_ready(
        module(input_query, input_key, input_value, input_box))
    assert bool(jnp.allclose(out2, ref_out, rtol=1e-2, atol=1e-2))
    assert module.box_attn.shape == (B, h, N, N)
    assert bool(jnp.allclose(module.box_attn, ref_attn, rtol=1e-2, atol=1e-2))

    print("KERNEL_OK")
</pallas_src>

<mosaic_0001>
module attributes {stable_mosaic.version = 11 : i64} {
  func.func @_fused_qkv_kernel(%arg0: i32, %arg1: memref<16x64xf32, #tpu.memory_space<vmem>>, %arg2: memref<16x64xf32, #tpu.memory_space<vmem>>, %arg3: memref<16x64xf32, #tpu.memory_space<vmem>>, %arg4: memref<64x64xf32, #tpu.memory_space<vmem>>, %arg5: memref<64x64xf32, #tpu.memory_space<vmem>>, %arg6: memref<64x64xf32, #tpu.memory_space<vmem>>, %arg7: memref<1x192xf32, #tpu.memory_space<vmem>>, %arg8: memref<16x192xf32, #tpu.memory_space<vmem>>) attributes {dimension_semantics = [#tpu.dimension_semantics<parallel>], iteration_bounds = array<i64: 1>, scalar_prefetch = 0 : i64, scratch_operands = 0 : i64, tpu.core_type = #tpu.core_type<tc>, window_params = [{transform_indices = @transform_0, window_bounds = array<i64: 16, 64>}, {transform_indices = @transform_1, window_bounds = array<i64: 16, 64>}, {transform_indices = @transform_2, window_bounds = array<i64: 16, 64>}, {pipeline_mode = #tpu.pipeline_mode<synchronous>, transform_indices = @transform_3, window_bounds = array<i64: 64, 64>}, {pipeline_mode = #tpu.pipeline_mode<synchronous>, transform_indices = @transform_4, window_bounds = array<i64: 64, 64>}, {pipeline_mode = #tpu.pipeline_mode<synchronous>, transform_indices = @transform_5, window_bounds = array<i64: 64, 64>}, {pipeline_mode = #tpu.pipeline_mode<synchronous>, transform_indices = @transform_6, window_bounds = array<i64: 1, 192>}, {transform_indices = @transform_7, window_bounds = array<i64: 16, 192>}]} {
    %c0 = arith.constant 0 : index
    %c0_0 = arith.constant 0 : index
    %0 = vector.load %arg1[%c0, %c0_0] : memref<16x64xf32, #tpu.memory_space<vmem>>, vector<16x64xf32>
    %c0_1 = arith.constant 0 : index
    %c0_2 = arith.constant 0 : index
    %1 = vector.load %arg4[%c0_1, %c0_2] : memref<64x64xf32, #tpu.memory_space<vmem>>, vector<64x64xf32>
    %cst = arith.constant dense<0.000000e+00> : vector<16x64xf32>
    %2 = tpu.matmul %0, %1, %cst {dimension_numbers = #tpu.dot_dimension_numbers<[1], [0], [0], [1], [0, 0, 1, 1], [], []>} : vector<16x64xf32>, vector<64x64xf32>, vector<16x64xf32> -> vector<16x64xf32>
    %c0_3 = arith.constant 0 : index
    %c0_4 = arith.constant 0 : index
    %3 = vector.load %arg2[%c0_3, %c0_4] : memref<16x64xf32, #tpu.memory_space<vmem>>, vector<16x64xf32>
    %c0_5 = arith.constant 0 : index
    %c0_6 = arith.constant 0 : index
    %4 = vector.load %arg5[%c0_5, %c0_6] : memref<64x64xf32, #tpu.memory_space<vmem>>, vector<64x64xf32>
    %cst_7 = arith.constant dense<0.000000e+00> : vector<16x64xf32>
    %5 = tpu.matmul %3, %4, %cst_7 {dimension_numbers = #tpu.dot_dimension_numbers<[1], [0], [0], [1], [0, 0, 1, 1], [], []>} : vector<16x64xf32>, vector<64x64xf32>, vector<16x64xf32> -> vector<16x64xf32>
    %c0_8 = arith.constant 0 : index
    %c0_9 = arith.constant 0 : index
    %6 = vector.load %arg3[%c0_8, %c0_9] : memref<16x64xf32, #tpu.memory_space<vmem>>, vector<16x64xf32>
    %c0_10 = arith.constant 0 : index
    %c0_11 = arith.constant 0 : index
    %7 = vector.load %arg6[%c0_10, %c0_11] : memref<64x64xf32, #tpu.memory_space<vmem>>, vector<64x64xf32>
    %cst_12 = arith.constant dense<0.000000e+00> : vector<16x64xf32>
    %8 = tpu.matmul %6, %7, %cst_12 {dimension_numbers = #tpu.dot_dimension_numbers<[1], [0], [0], [1], [0, 0, 1, 1], [], []>} : vector<16x64xf32>, vector<64x64xf32>, vector<16x64xf32> -> vector<16x64xf32>
    %9 = tpu.concatenate %2, %5, %8 in 1 : vector<16x64xf32>, vector<16x64xf32>, vector<16x64xf32> -> vector<16x192xf32>
    %c0_13 = arith.constant 0 : index
    %c0_14 = arith.constant 0 : index
    %10 = vector.load %arg7[%c0_13, %c0_14] : memref<1x192xf32, #tpu.memory_space<vmem>>, vector<1x192xf32>
    %11 = vector.broadcast %10 : vector<1x192xf32> to vector<16x192xf32>
    %12 = arith.addf %9, %11 : vector<16x192xf32>
    %c0_15 = arith.constant 0 : index
    %c0_16 = arith.constant 0 : index
    %13 = vector.load %arg8[%c0_15, %c0_16] : memref<16x192xf32, #tpu.memory_space<vmem>>, vector<16x192xf32>
    tpu.vector_store %arg8[%c0_15, %c0_16], %12 {strides = array<i32>} : memref<16x192xf32, #tpu.memory_space<vmem>>, vector<16x192xf32>,
    return
  }
  func.func @transform_0(%arg0: i32) -> (i32, i32) {
    %c0_i32 = arith.constant 0 : i32
    %c0_i32_0 = arith.constant 0 : i32
    return %arg0, %c0_i32 : i32, i32
  }
  func.func @transform_1(%arg0: i32) -> (i32, i32) {
    %c0_i32 = arith.constant 0 : i32
    %c0_i32_0 = arith.constant 0 : i32
    return %arg0, %c0_i32 : i32, i32
  }
  func.func @transform_2(%arg0: i32) -> (i32, i32) {
    %c0_i32 = arith.constant 0 : i32
    %c0_i32_0 = arith.constant 0 : i32
    return %arg0, %c0_i32 : i32, i32
  }
  func.func @transform_3(%arg0: i32) -> (i32, i32) {
    %c0_i32 = arith.constant 0 : i32
    %c0_i32_0 = arith.constant 0 : i32
    %c0_i32_1 = arith.constant 0 : i32
    return %c0_i32, %c0_i32_0 : i32, i32
  }
  func.func @transform_4(%arg0: i32) -> (i32, i32) {
    %c0_i32 = arith.constant 0 : i32
    %c0_i32_0 = arith.constant 0 : i32
    %c0_i32_1 = arith.constant 0 : i32
    return %c0_i32, %c0_i32_0 : i32, i32
  }
  func.func @transform_5(%arg0: i32) -> (i32, i32) {
    %c0_i32 = arith.constant 0 : i32
    %c0_i32_0 = arith.constant 0 : i32
    %c0_i32_1 = arith.constant 0 : i32
    return %c0_i32, %c0_i32_0 : i32, i32
  }
  func.func @transform_6(%arg0: i32) -> (i32, i32) {
    %c0_i32 = arith.constant 0 : i32
    %c0_i32_0 = arith.constant 0 : i32
    %c0_i32_1 = arith.constant 0 : i32
    return %c0_i32, %c0_i32_0 : i32, i32
  }
  func.func @transform_7(%arg0: i32) -> (i32, i32) {
    %c0_i32 = arith.constant 0 : i32
    %c0_i32_0 = arith.constant 0 : i32
    return %arg0, %c0_i32 : i32, i32
  }
}

</mosaic_0001>

<llo_original>
// kernel: tpu_custom_call.1
$region0: #{tpu_custom_call.1}
  #allocation0 [shape = 'u32[]', space=smem, size = 0x4, offset = 0x4, fixed_abs, tag = 'smem constant byte address 0x4 - core index']
  #allocation1 [shape = 'u32[72,128]{1,0:T(1,128)}', space=vmem, size = 0x9000, scoped, tag = 'internal scratch']
  %s0 = inlined_call_operand.hbm [shape: f32[16,64], index: 0, kind: input, shape index: {}]
  %s1 = inlined_call_operand.hbm [shape: f32[16,64], index: 1, kind: input, shape index: {}]
  %s2 = inlined_call_operand.hbm [shape: f32[16,64], index: 2, kind: input, shape index: {}]
  %s3 = inlined_call_operand.hbm [shape: f32[64,64], index: 3, kind: input, shape index: {}]
  %s4 = inlined_call_operand.hbm [shape: f32[64,64], index: 4, kind: input, shape index: {}]
  %s5 = inlined_call_operand.hbm [shape: f32[64,64], index: 5, kind: input, shape index: {}]
  %s6 = inlined_call_operand.vmem [shape: f32[1,192], index: 6, kind: input, shape index: {}]
  %s7 = inlined_call_operand.hbm [shape: f32[16,192], index: 7, kind: output, shape index: {}]
  %s8 = sld [smem:[#allocation0]]
  $region62: #{tpu_custom_call.1} parent=0
    _
  %s10 = ssub.s32 1, %s8
  %s11 = scalar_select 0, %s10, %s8
  $region1: #{tpu_custom_call.1} parent=0
    #allocation2 [shape = 'u8[8192]{0}', space=vmem, size = 0x2000, scoped, tag = 'input window, operand 0, single buffered']
    #allocation3 [shape = 's32[1]{0}', space=sflag, size = 0x4, scoped, tag = 'scoped memory for tpu_custom_call.1']
    #allocation4 [shape = 's32[1]{0}', space=sflag, size = 0x4, scoped, tag = 'scoped memory for tpu_custom_call.1']
    #allocation5 [shape = 'u8[8192]{0}', space=vmem, size = 0x2000, scoped, tag = 'input window, operand 1, single buffered']
    #allocation6 [shape = 's32[1]{0}', space=sflag, size = 0x4, scoped, tag = 'scoped memory for tpu_custom_call.1']
    #allocation7 [shape = 'u8[8192]{0}', space=vmem, size = 0x2000, scoped, tag = 'input window, operand 2, single buffered']
    #allocation8 [shape = 'u8[32768]{0}', space=vmem, size = 0x8000, scoped, tag = 'input window, operand 3, single buffered']
    #allocation9 [shape = 's32[1]{0}', space=sflag, size = 0x4, scoped, tag = 'scoped memory for tpu_custom_call.1']
    #allocation10 [shape = 'u8[32768]{0}', space=vmem, size = 0x8000, scoped, tag = 'input window, operand 4, single buffered']
    #allocation11 [shape = 'u8[32768]{0}', space=vmem, size = 0x8000, scoped, tag = 'input window, operand 5, single buffered']
    #allocation12 [shape = 's32[1]{0}', space=sflag, size = 0x4, scoped, tag = 'scoped memory for tpu_custom_call.1']
    #allocation13 [shape = 'u8[16384]{0}', space=vmem, size = 0x4000, scoped, tag = 'output window, operand 0, single buffered']
    %12 = vsyncpa [#allocation3], 0
    %13 = vsyncpa [#allocation6], 0
    %14 = vsyncpa [#allocation9], 0
    %15 = vsyncpa [#allocation12], 0
    %16 = vsyncpa [#allocation4], 0
    // Predicated region
    $region2: #{tpu_custom_call.1} parent=1 // pred_check
      _
    $region3: #{tpu_custom_call.1} parent=1 // pred_check_branch
      %18 = sbr.rel (0) target = $region5
    $region4: #{tpu_custom_call.1} parent=1 // pred_region
      %20 = vsyncadd [#allocation3], 0
      %s21 = sshll.u32 %s0, 4
      %s22 = int_to_ptr.hbm [resolvable:$true] %s21
      %s23 = sshll.u32 [#allocation2], 4
      %s24 = int_to_ptr.vmem [resolvable:$true] %s23
      %29 = dma.hbm_to_vmem [thread:$0]  %s22, 256, %s24, [#allocation3], 128, 128, 8
    $region5: #{tpu_custom_call.1} parent=1 // pred_fallthru
      _
    // Predicated region
    $region6: #{tpu_custom_call.1} parent=1 // pred_check
      _
    $region7: #{tpu_custom_call.1} parent=1 // pred_check_branch
      %31 = sbr.rel (0) target = $region9
    $region8: #{tpu_custom_call.1} parent=1 // pred_region
      %33 = vsyncadd [#allocation6], 0
      %s34 = sshll.u32 %s1, 4
      %s35 = int_to_ptr.hbm [resolvable:$true] %s34
      %s36 = sshll.u32 [#allocation5], 4
      %s37 = int_to_ptr.vmem [resolvable:$true] %s36
      %42 = dma.hbm_to_vmem [thread:$0]  %s35, 256, %s37, [#allocation6], 128, 128, 8
    $region9: #{tpu_custom_call.1} parent=1 // pred_fallthru
      _
    // Predicated region
    $region10: #{tpu_custom_call.1} parent=1 // pred_check
      _
    $region11: #{tpu_custom_call.1} parent=1 // pred_check_branch
      %44 = sbr.rel (0) target = $region13
    $region12: #{tpu_custom_call.1} parent=1 // pred_region
      %46 = vsyncadd [#allocation6], 0
      %s47 = sshll.u32 %s2, 4
      %s48 = int_to_ptr.hbm [resolvable:$true] %s47
      %s49 = sshll.u32 [#allocation7], 4
      %s50 = int_to_ptr.vmem [resolvable:$true] %s49
      %55 = dma.hbm_to_vmem [thread:$0]  %s48, 256, %s50, [#allocation6], 128, 128, 8
    $region13: #{tpu_custom_call.1} parent=1 // pred_fallthru
      _
    // Predicated region
    $region14: #{tpu_custom_call.1} parent=1 // pred_check
      _
    $region15: #{tpu_custom_call.1} parent=1 // pred_check_branch
      %57 = sbr.rel (0) target = $region17
    $region16: #{tpu_custom_call.1} parent=1 // pred_region
      %59 = vsyncadd [#allocation9], 0
      %s60 = sshll.u32 %s3, 4
      %s61 = int_to_ptr.hbm [resolvable:$true] %s60
      %s62 = sshll.u32 [#allocation8], 4
      %s63 = int_to_ptr.vmem [resolvable:$true] %s62
      %68 = dma.hbm_to_vmem [thread:$0]  %s61, 1024, %s63, [#allocation9], 128, 128, 8
    $region17: #{tpu_custom_call.1} parent=1 // pred_fallthru
      _
    // Predicated region
    $region18: #{tpu_custom_call.1} parent=1 // pred_check
      _
    $region19: #{tpu_custom_call.1} parent=1 // pred_check_branch
      %70 = sbr.rel (0) target = $region21
    $region20: #{tpu_custom_call.1} parent=1 // pred_region
      %72 = vsyncadd [#allocation9], 0
      %s73 = sshll.u32 %s4, 4
      %s74 = int_to_ptr.hbm [resolvable:$true] %s73
      %s75 = sshll.u32 [#allocation10], 4
      %s76 = int_to_ptr.vmem [resolvable:$true] %s75
      %81 = dma.hbm_to_vmem [thread:$0]  %s74, 1024, %s76, [#allocation9], 128, 128, 8
    $region21: #{tpu_custom_call.1} parent=1 // pred_fallthru
      _
    // Predicated region
    $region22: #{tpu_custom_call.1} parent=1 // pred_check
      _
    $region23: #{tpu_custom_call.1} parent=1 // pred_check_branch
      %83 = sbr.rel (0) target = $region25
    $region24: #{tpu_custom_call.1} parent=1 // pred_region
      %85 = vsyncadd [#allocation12], 0
      %s86 = sshll.u32 %s5, 4
      %s87 = int_to_ptr.hbm [resolvable:$true] %s86
      %s88 = sshll.u32 [#allocation11], 4
      %s89 = int_to_ptr.vmem [resolvable:$true] %s88
      %94 = dma.hbm_to_vmem [thread:$0]  %s87, 1024, %s89, [#allocation12], 128, 128, 8
    $region25: #{tpu_custom_call.1} parent=1 // pred_fallthru
      _
    // Predicated region
    $region26: #{tpu_custom_call.1} parent=1 // pred_check
      _
    $region27: #{tpu_custom_call.1} parent=1 // pred_check_branch
      %96 = sbr.rel (0) target = $region29
    $region28: #{tpu_custom_call.1} parent=1 // pred_region
      _
    $region29: #{tpu_custom_call.1} parent=1 // pred_fallthru
      _
    // Predicated region
    $region30: #{tpu_custom_call.1} parent=1 // pred_check
      _
    $region31: #{tpu_custom_call.1} parent=1 // pred_check_branch
      %98 = sbr.rel (0) target = $region33
    $region32: #{tpu_custom_call.1} parent=1 // pred_region
      %100 = dma.done [#allocation3], 256
    $region33: #{tpu_custom_call.1} parent=1 // pred_fallthru
      _
    // Predicated region
    $region34: #{tpu_custom_call.1} parent=1 // pred_check
      _
    $region35: #{tpu_custom_call.1} parent=1 // pred_check_branch
      %102 = sbr.rel (0) target = $region37
    $region36: #{tpu_custom_call.1} parent=1 // pred_region
      %104 = dma.done [#allocation6], 256
    $region37: #{tpu_custom_call.1} parent=1 // pred_fallthru
      _
    // Predicated region
    $region38: #{tpu_custom_call.1} parent=1 // pred_check
      _
    $region39: #{tpu_custom_call.1} parent=1 // pred_check_branch
      %106 = sbr.rel (0) target = $region41
    $region40: #{tpu_custom_call.1} parent=1 // pred_region
      %108 = dma.done [#allocation6], 256
    $region41: #{tpu_custom_call.1} parent=1 // pred_fallthru
      _
    // Predicated region
    $region42: #{tpu_custom_call.1} parent=1 // pred_check
      _
    $region43: #{tpu_custom_call.1} parent=1 // pred_check_branch
      %110 = sbr.rel (0) target = $region45
    $region44: #{tpu_custom_call.1} parent=1 // pred_region
      %112 = dma.done [#allocation9], 1024
    $region45: #{tpu_custom_call.1} parent=1 // pred_fallthru
      _
    // Predicated region
    $region46: #{tpu_custom_call.1} parent=1 // pred_check
      _
    $region47: #{tpu_custom_call.1} parent=1 // pred_check_branch
      %114 = sbr.rel (0) target = $region49
    $region48: #{tpu_custom_call.1} parent=1 // pred_region
      %116 = dma.done [#allocation9], 1024
    $region49: #{tpu_custom_call.1} parent=1 // pred_fallthru
      _
    // Predicated region
    $region50: #{tpu_custom_call.1} parent=1 // pred_check
      _
    $region51: #{tpu_custom_call.1} parent=1 // pred_check_branch
      %118 = sbr.rel (0) target = $region53
    $region52: #{tpu_custom_call.1} parent=1 // pred_region
      %120 = dma.done [#allocation12], 1024
    $region53: #{tpu_custom_call.1} parent=1 // pred_fallthru
      _
    %v121 = vld [vmem:[#allocation2] sm:$0xff]
    %v122 = vld [vmem:[#allocation2 + $0x8] sm:$0xff]
    %v123 = vld [vmem:[#allocation8] sm:$0xff]
    %v124 = vld [vmem:[#allocation8 + $0x8] sm:$0xff]
    %v125 = vld [vmem:[#allocation8 + $0x10] sm:$0xff]
    %v126 = vld [vmem:[#allocation8 + $0x18] sm:$0xff]
    %v127 = vld [vmem:[#allocation8 + $0x20] sm:$0xff]
    %v128 = vld [vmem:[#allocation8 + $0x28] sm:$0xff]
    %v129 = vld [vmem:[#allocation8 + $0x30] sm:$0xff]
    %v130 = vld [vmem:[#allocation8 + $0x38] sm:$0xff]
    %vm131 = vcmask 523264
    %v133 = vsel %vm131, %v121, 0
    %v136 = vsel %vm131, %v122, 0
    %138 = vmatpush.msra.mxu0 0.0
    %139 = vmatpush.msra.mxu0 0.0
    %140 = vmatpush.msra.mxu0 0.0
    %141 = vmatpush.msra.mxu0 0.0
    %142 = vmatpush.msra.mxu0 0.0
    %143 = vmatpush.msra.mxu0 0.0
    %144 = vmatpush.msra.mxu0 0.0
    %145 = vmatpush.msra.mxu0 0.0
    %146 = vmatpush.msra.mxu0 %v130
    %147 = vmatpush.msra.mxu0 %v129
    %148 = vmatpush.msra.mxu0 %v128
    %149 = vmatpush.msra.mxu0 %v127
    %150 = vmatpush.msra.mxu0 %v126
    %151 = vmatpush.msra.mxu0 %v125
    %152 = vmatpush.msra.mxu0 %v124
    %153 = vmatpush.msra.mxu0 %v123
    %154 = vmatmul.f32.gmra.mxu0 %v133
    %v155 = vpop.f32.mrf.mxu0
    %v156 = vadd.f32 0.0, %v155
    %157 = vmatmul.f32.gmra.mxu0 %v136
    %v158 = vpop.f32.mrf.mxu0
    %v159 = vadd.f32 0.0, %v158
    %160 = vdwg.mxu0
    %v161 = vld [vmem:[#allocation5] sm:$0xff]
    %v162 = vld [vmem:[#allocation5 + $0x8] sm:$0xff]
    %v163 = vld [vmem:[#allocation10] sm:$0xff]
    %v164 = vld [vmem:[#allocation10 + $0x8] sm:$0xff]
    %v165 = vld [vmem:[#allocation10 + $0x10] sm:$0xff]
    %v166 = vld [vmem:[#allocation10 + $0x18] sm:$0xff]
    %v167 = vld [vmem:[#allocation10 + $0x20] sm:$0xff]
    %v168 = vld [vmem:[#allocation10 + $0x28] sm:$0xff]
    %v169 = vld [vmem:[#allocation10 + $0x30] sm:$0xff]
    %v170 = vld [vmem:[#allocation10 + $0x38] sm:$0xff]
    %v172 = vsel %vm131, %v161, 0
    %v175 = vsel %vm131, %v162, 0
    %177 = vmatpush.msra.mxu0 0.0
    %178 = vmatpush.msra.mxu0 0.0
    %179 = vmatpush.msra.mxu0 0.0
    %180 = vmatpush.msra.mxu0 0.0
    %181 = vmatpush.msra.mxu0 0.0
    %182 = vmatpush.msra.mxu0 0.0
    %183 = vmatpush.msra.mxu0 0.0
    %184 = vmatpush.msra.mxu0 0.0
    %185 = vmatpush.msra.mxu0 %v170
    %186 = vmatpush.msra.mxu0 %v169
    %187 = vmatpush.msra.mxu0 %v168
    %188 = vmatpush.msra.mxu0 %v167
    %189 = vmatpush.msra.mxu0 %v166
    %190 = vmatpush.msra.mxu0 %v165
    %191 = vmatpush.msra.mxu0 %v164
    %192 = vmatpush.msra.mxu0 %v163
    %193 = vmatmul.f32.gmra.mxu0 %v172
    %v194 = vpop.f32.mrf.mxu0
    %v195 = vadd.f32 0.0, %v194
    %196 = vmatmul.f32.gmra.mxu0 %v175
    %v197 = vpop.f32.mrf.mxu0
    %v198 = vadd.f32 0.0, %v197
    %199 = vdwg.mxu0
    %v200 = vld [vmem:[#allocation7] sm:$0xff]
    %v201 = vld [vmem:[#allocation7 + $0x8] sm:$0xff]
    %v202 = vld [vmem:[#allocation11] sm:$0xff]
    %v203 = vld [vmem:[#allocation11 + $0x8] sm:$0xff]
    %v204 = vld [vmem:[#allocation11 + $0x10] sm:$0xff]
    %v205 = vld [vmem:[#allocation11 + $0x18] sm:$0xff]
    %v206 = vld [vmem:[#allocation11 + $0x20] sm:$0xff]
    %v207 = vld [vmem:[#allocation11 + $0x28] sm:$0xff]
    %v208 = vld [vmem:[#allocation11 + $0x30] sm:$0xff]
    %v209 = vld [vmem:[#allocation11 + $0x38] sm:$0xff]
    %v211 = vsel %vm131, %v200, 0
    %v214 = vsel %vm131, %v201, 0
    %216 = vmatpush.msra.mxu0 0.0
    %217 = vmatpush.msra.mxu0 0.0
    %218 = vmatpush.msra.mxu0 0.0
    %219 = vmatpush.msra.mxu0 0.0
    %220 = vmatpush.msra.mxu0 0.0
    %221 = vmatpush.msra.mxu0 0.0
    %222 = vmatpush.msra.mxu0 0.0
    %223 = vmatpush.msra.mxu0 0.0
    %224 = vmatpush.msra.mxu0 %v209
    %225 = vmatpush.msra.mxu0 %v208
    %226 = vmatpush.msra.mxu0 %v207
    %227 = vmatpush.msra.mxu0 %v206
    %228 = vmatpush.msra.mxu0 %v205
    %229 = vmatpush.msra.mxu0 %v204
    %230 = vmatpush.msra.mxu0 %v203
    %231 = vmatpush.msra.mxu0 %v202
    %232 = vmatmul.f32.gmra.mxu0 %v211
    %v233 = vpop.f32.mrf.mxu0
    %v234 = vadd.f32 0.0, %v233
    %235 = vmatmul.f32.gmra.mxu0 %v214
    %v236 = vpop.f32.mrf.mxu0
    %v237 = vadd.f32 0.0, %v236
    %238 = vdwg.mxu0
    %241 = vrot.lane.b32.xlu0 %v195, 64
    %v242 = vpop.permute.xlu0 %241
    %243 = vrot.lane.b32.xlu0 %v198, 64
    %v244 = vpop.permute.xlu0 %243
    %v247 = vsel %vm131, %v156, %v242
    %v248 = vsel %vm131, %v159, %v244
    %v249 = vld [vmem:[%s6] sm:$0x3]
    %v251 = vperm.slane %v249, 0
    %v252 = vperm.slane %v249, 1
    %v255 = vadd.f32 %v247, %v251
    %v256 = vadd.f32 %v234, %v252
    %v257 = vadd.f32 %v248, %v251
    %v258 = vadd.f32 %v237, %v252
    %259 = vst [vmem:[#allocation13] sm:$0xff] %v255
    %260 = vst.msk [vmem:[#allocation13 + $0x8] sm:$0xff] %vm131, %v256
    %261 = vst [vmem:[#allocation13 + $0x10] sm:$0xff] %v257
    %262 = vst.msk [vmem:[#allocation13 + $0x18] sm:$0xff] %vm131, %v258
    // Predicated region
    $region54: #{tpu_custom_call.1} parent=1 // pred_check
      _
    $region55: #{tpu_custom_call.1} parent=1 // pred_check_branch
      %264 = sbr.rel (0) target = $region57
    $region56: #{tpu_custom_call.1} parent=1 // pred_region
      %266 = vsyncadd [#allocation4], 0
      %s267 = sshll.u32 [#allocation13], 4
      %s268 = int_to_ptr.vmem [resolvable:$true] %s267
      %s269 = sshll.u32 %s7, 4
      %s270 = int_to_ptr.hbm [resolvable:$true] %s269
      %275 = dma.vmem_to_hbm [thread:$0]  %s268, 512, %s270, [#allocation4], 256, 256, 16
    $region57: #{tpu_custom_call.1} parent=1 // pred_fallthru
      _
    // Predicated region
    $region58: #{tpu_custom_call.1} parent=1 // pred_check
      _
    $region59: #{tpu_custom_call.1} parent=1 // pred_check_branch
      %277 = sbr.rel (0) target = $region61
    $region60: #{tpu_custom_call.1} parent=1 // pred_region
      %279 = dma.done [#allocation4], 512
    $region61: #{tpu_custom_call.1} parent=1 // pred_fallthru
      _
    %280 = vsyncpa [#allocation3], 1
    %281 = vsyncpa [#allocation6], 1
    %282 = vsyncpa [#allocation9], 1
    %283 = vsyncpa [#allocation12], 1
    %284 = vsyncpa [#allocation4], 1

</llo_original>
